<compile_context>
chip_gen: v5e
topology: v5e:2x2
jax: 0.10.0
libtpu: 0.0.40
codegen_flags: <defaults>
</compile_context>

<pallas_src>
import functools

import jax
import jax.numpy as jnp
from jax.experimental import pallas as pl
from jax.experimental.pallas import tpu as pltpu

EPS = 1e-8        # nn.CosineSimilarity default eps (clamps the norm *product*)
EPS_ROW = 1e-4    # per-row norm clamp; EPS_ROW**2 == EPS
PAD_OUT = 128     # lane-pad the 96/72-wide layers to 128 (zero cols, exact)


def _round_up(n, m):
    return ((n + m - 1) // m) * m


def net_kernel(x_ref, w1_ref, b1_ref, w2_ref, b2_ref, w3_ref, b3_ref,
               sum_g_ref, sum_gg_ref, *, n_rows, tile_n, steps_per_split):
    c = pl.program_id(0)    # "parallel" split (v7x megacore); size 1 on tiny inputs
    s = pl.program_id(1)    # "arbitrary" reduction axis: streamed row tiles

    @pl.when(s == 0)
    def _init():
        sum_g_ref[...] = jnp.zeros_like(sum_g_ref)
        sum_gg_ref[...] = jnp.zeros_like(sum_gg_ref)

    # ---- 3-layer MLP on this row tile: bf16 MXU matmuls, f32 accumulation ----
    x = x_ref[...].astype(jnp.bfloat16)                                  # (tile_n, D)
    h1 = jnp.dot(x, w1_ref[...], preferred_element_type=jnp.float32) + b1_ref[...]
    h1 = jnp.maximum(h1, 0.0)                                            # (tile_n, 128) f32
    h2 = jnp.dot(h1.astype(jnp.bfloat16), w2_ref[...],
                 preferred_element_type=jnp.float32) + b2_ref[...]
    h2 = jnp.maximum(h2, 0.0)                                            # cols >= 96 are 0
    f = jnp.dot(h2.astype(jnp.bfloat16), w3_ref[...],
                preferred_element_type=jnp.float32) + b3_ref[...]
    # f: (tile_n, 128) f32; cols >= 72 are exactly 0 (zero-padded weights/bias)

    # Mask rows past the true N (zero padding added by the wrapper).
    row0 = (c * steps_per_split + s) * tile_n
    row_ids = row0 + jax.lax.broadcasted_iota(jnp.int32, (tile_n, 1), 0)
    valid = row_ids < n_rows

    # ---- row normalization (f32, EUP rsqrt) + running sums for the identity ----
    sq = jnp.sum(f * f, axis=-1, keepdims=True)                          # ||f_i||^2
    inv = jax.lax.rsqrt(jnp.maximum(sq, EPS_ROW * EPS_ROW))
    g = f * jnp.where(valid, inv, 0.0)                                   # padding rows zeroed

    # Lane/sublane-resident partial sums: no per-step cross-lane reduce and no
    # masked (1,1) store; the final reduction happens once in the wrapper.
    tiles = tile_n // 8
    sum_g_ref[...] += jnp.sum(g.reshape(tiles, 8, PAD_OUT), axis=0)[None]
    sum_gg_ref[...] += jnp.sum((g * g).reshape(tiles, 8, PAD_OUT), axis=0)[None]


def _vmem_budget_bytes():
    # ~3/4 of physical VMEM, capped at 96 MiB: 96 MiB on v5e/v6e (128 MiB
    # physical), 48 MiB on v7x (64 MiB per TensorCore).
    try:
        cap = int(pltpu.get_tpu_info().vmem_capacity_bytes)
    except Exception:
        cap = 64 << 20
    return min((cap * 3) // 4, 96 << 20)


def _auto_tile_n(d, x_itemsize, vmem_budget):
    # Target ~1 MiB of x per grid step (amortizes the ~0.35 us/step grid
    # overhead), capped so the double-buffered x tile + f32 intermediates +
    # resident weights fit the per-generation VMEM budget.
    weight_bytes = d * 128 * 2 + 2 * PAD_OUT * PAD_OUT * 2 + 3 * PAD_OUT * 4
    per_row = 2 * x_itemsize * d + 6 * PAD_OUT * 4   # 2 x-buffers + h1/h2/f/g temps
    avail = max(vmem_budget - weight_bytes - (4 << 20), per_row * 8)
    target = max(256, (1 << 20) // (x_itemsize * d))
    return min(target, avail // per_row, 8192)


def net_forward(x, params, tile_n=None):
    """x: (B, T, D) float32/bfloat16 -> (1,) float32 (same value as Net.forward)."""
    w1, b1, w2, b2, w3, b3 = params
    B, T, D = x.shape
    n = B * T
    # The pairwise-cosine sum is invariant to row order, so a plain reshape
    # replaces the original (t, b)-ordered transpose+concat (saves an HBM pass).
    # x is streamed in its incoming dtype (pass bf16 to halve HBM traffic).
    x_flat = x.reshape(n, D)

    vmem_budget = _vmem_budget_bytes()
    if tile_n is None:
        tile_n = _auto_tile_n(D, x_flat.dtype.itemsize, vmem_budget)
    tile_n = max(8, min(_round_up(int(tile_n), 8), _round_up(n, 8)))
    if tile_n >= 256:
        tile_n = (tile_n // 256) * 256   # full 256-row MXU cadence on v6e/v7x

    n_tiles = pl.cdiv(n, tile_n)
    n_splits = 2 if n_tiles >= 2 else 1          # leading "parallel" axis (v7x 2 TCs)
    steps_per_split = pl.cdiv(n_tiles, n_splits)
    n_pad = n_splits * steps_per_split * tile_n
    if n_pad != n:
        x_flat = jnp.pad(x_flat, ((0, n_pad - n), (0, 0)))

    # bf16 weights feed the MXU directly; biases stay f32 (added post-matmul).
    w1b, w2b, w3b = (w.astype(jnp.bfloat16) for w in (w1, w2, w3))

    kernel = functools.partial(net_kernel, n_rows=n, tile_n=tile_n,
                               steps_per_split=steps_per_split)
    resident = lambda c, s: (0, 0)   # weights/biases: same block every step
    part_spec = pl.BlockSpec((1, 8, PAD_OUT), lambda c, s: (c, 0, 0))

    # TODO(synk): if a profile on large-D inputs shows exposed DMA on the x
    # stream, add pipeline_mode=pl.Buffered(3) to the x BlockSpec.
    sum_g, sum_gg = pl.pallas_call(
        kernel,
        out_shape=(jax.ShapeDtypeStruct((n_splits, 8, PAD_OUT), jnp.float32),
                   jax.ShapeDtypeStruct((n_splits, 8, PAD_OUT), jnp.float32)),
        grid_spec=pltpu.PrefetchScalarGridSpec(
            num_scalar_prefetch=0,
            grid=(n_splits, steps_per_split),
            in_specs=[
                pl.BlockSpec((tile_n, D), lambda c, s: (c * steps_per_split + s, 0)),
                pl.BlockSpec((D, 128), resident),            # w1 (bf16)
                pl.BlockSpec((1, 128), resident),            # b1 (f32)
                pl.BlockSpec((PAD_OUT, PAD_OUT), resident),  # w2 (bf16, lane-padded)
                pl.BlockSpec((1, PAD_OUT), resident),        # b2 (f32)
                pl.BlockSpec((PAD_OUT, PAD_OUT), resident),  # w3 (bf16, lane-padded)
                pl.BlockSpec((1, PAD_OUT), resident),        # b3 (f32)
            ],
            out_specs=(part_spec, part_spec),
        ),
        compiler_params=pltpu.CompilerParams(
            dimension_semantics=("parallel", "arbitrary"),
            vmem_limit_bytes=int(vmem_budget),
        ),
    )(x_flat, w1b, b1, w2b, b2, w3b, b3)

    # Tiny cross-split / cross-lane combine (kept outside the kernel so the
    # "parallel" axis can shard across v7x's two TensorCores).
    s_vec = jnp.sum(sum_g, axis=(0, 1))                       # sum_i g_i, (128,)
    pair_sum = 0.5 * (jnp.dot(s_vec, s_vec) - jnp.sum(sum_gg))
    return (pair_sum / jnp.float32(n)).reshape(1)


def init_params(key, inputdim, outputdim=72):
    """nn.Linear-style init; 96/72-wide layers are zero-padded to 128 lanes.

    Padding is mathematically exact: the extra hidden/output columns are
    identically zero and contribute nothing to dot products or norms.
    """
    ks = jax.random.split(key, 6)

    def lin(kw, kb, fan_in, fan_out):
        bound = 1.0 / jnp.sqrt(jnp.float32(fan_in))
        w = jax.random.uniform(kw, (fan_in, fan_out), jnp.float32, -bound, bound)
        b = jax.random.uniform(kb, (1, fan_out), jnp.float32, -bound, bound)
        return w, b

    w1, b1 = lin(ks[0], ks[1], inputdim, 128)
    w2, b2 = lin(ks[2], ks[3], 128, 96)
    w3, b3 = lin(ks[4], ks[5], 96, outputdim)

    w2p = jnp.pad(w2, ((0, 0), (0, PAD_OUT - 96)))
    b2p = jnp.pad(b2, ((0, 0), (0, PAD_OUT - 96)))
    w3p = jnp.pad(w3, ((0, PAD_OUT - 96), (0, PAD_OUT - outputdim)))
    b3p = jnp.pad(b3, ((0, 0), (0, PAD_OUT - outputdim)))
    return (w1, b1, w2p, b2p, w3p, b3p)


def net_forward_ref(x, params, matmul_dtype=jnp.float32):
    """Pure-JAX reference: original O(N^2) product-clamped cosine math.

    matmul_dtype=jnp.bfloat16 reproduces the kernel's bf16-MXU/f32-accumulate
    rounding; jnp.float32 is the original full-precision module semantics.
    """
    w1, b1, w2, b2, w3, b3 = params   # padded params; padding is exact

    def mm(a, w):
        return jnp.dot(a.astype(matmul_dtype), w.astype(matmul_dtype),
                       preferred_element_type=jnp.float32)

    B, T, D = x.shape
    xf = jnp.transpose(x, (1, 0, 2)).reshape(T * B, D).astype(jnp.float32)
    h = jax.nn.relu(mm(xf, w1) + b1)
    h = jax.nn.relu(mm(h, w2) + b2)
    f = mm(h, w3) + b3
    n = f.shape[0]
    norms = jnp.sqrt(jnp.sum(f * f, axis=-1, keepdims=True))
    cos = (f @ f.T) / jnp.maximum(norms * norms.T, EPS)
    mask = jnp.triu(jnp.ones((n, n), bool), k=1)
    return (jnp.sum(jnp.where(mask, cos, 0.0)) / n).reshape(1)


if __name__ == "__main__":
    key = jax.random.PRNGKey(0)
    kx, kp, kx2 = jax.random.split(key, 3)

    # Small shape matching the module: x = (batch, seq, inputdim); N = 8 rows.
    B, T, D = 2, 4, 32
    params = init_params(kp, D, 72)

    x = jax.random.normal(kx, (B, T, D), jnp.float32)
    out = jax.block_until_ready(net_forward(x, params))
    assert out.shape == (1,)
    ref_b = net_forward_ref(x, params, jnp.bfloat16)   # same matmul rounding as kernel
    ref_f = net_forward_ref(x, params, jnp.float32)    # original full-f32 math
    assert jnp.allclose(out, ref_b, atol=5e-3, rtol=5e-3), (out, ref_b)
    assert jnp.allclose(out, ref_f, atol=5e-2, rtol=5e-2), (out, ref_f)

    # Multi-tile + parallel-split + row-masking + bf16-input-stream path:
    # N = 150 rows, tile_n=64 -> grid (2 splits, 2 steps) with padded rows masked.
    B2, T2 = 3, 50
    x2 = jax.random.normal(kx2, (B2, T2, D), jnp.float32)
    out2 = jax.block_until_ready(net_forward(x2.astype(jnp.bfloat16), params, tile_n=64))
    ref2_b = net_forward_ref(x2, params, jnp.bfloat16)
    ref2_f = net_forward_ref(x2, params, jnp.float32)
    assert jnp.allclose(out2, ref2_b, atol=2e-2, rtol=2e-2), (out2, ref2_b)
    assert jnp.allclose(out2, ref2_f, atol=2e-1, rtol=5e-2), (out2, ref2_f)

    print("KERNEL_OK")
</pallas_src>

<mosaic_0001>
module attributes {stable_mosaic.version = 11 : i64} {
  func.func @net_kernel(%arg0: i32, %arg1: i32, %arg2: memref<8x32xf32, #tpu.memory_space<vmem>>, %arg3: memref<32x128xbf16, #tpu.memory_space<vmem>>, %arg4: memref<1x128xf32, #tpu.memory_space<vmem>>, %arg5: memref<128x128xbf16, #tpu.memory_space<vmem>>, %arg6: memref<1x128xf32, #tpu.memory_space<vmem>>, %arg7: memref<128x128xbf16, #tpu.memory_space<vmem>>, %arg8: memref<1x128xf32, #tpu.memory_space<vmem>>, %arg9: memref<1x8x128xf32, #tpu.memory_space<vmem>>, %arg10: memref<1x8x128xf32, #tpu.memory_space<vmem>>) attributes {dimension_semantics = [#tpu.dimension_semantics<parallel>, #tpu.dimension_semantics<arbitrary>], iteration_bounds = array<i64: 1, 1>, scalar_prefetch = 0 : i64, scratch_operands = 0 : i64, tpu.core_type = #tpu.core_type<tc>, window_params = [{transform_indices = @transform_0, window_bounds = array<i64: 8, 32>}, {pipeline_mode = #tpu.pipeline_mode<synchronous>, transform_indices = @transform_1, window_bounds = array<i64: 32, 128>}, {pipeline_mode = #tpu.pipeline_mode<synchronous>, transform_indices = @transform_2, window_bounds = array<i64: 1, 128>}, {pipeline_mode = #tpu.pipeline_mode<synchronous>, transform_indices = @transform_3, window_bounds = array<i64: 128, 128>}, {pipeline_mode = #tpu.pipeline_mode<synchronous>, transform_indices = @transform_4, window_bounds = array<i64: 1, 128>}, {pipeline_mode = #tpu.pipeline_mode<synchronous>, transform_indices = @transform_5, window_bounds = array<i64: 128, 128>}, {pipeline_mode = #tpu.pipeline_mode<synchronous>, transform_indices = @transform_6, window_bounds = array<i64: 1, 128>}, {transform_indices = @transform_7, window_bounds = array<i64: 1, 8, 128>}, {transform_indices = @transform_8, window_bounds = array<i64: 1, 8, 128>}]} {
    %c0_i32 = arith.constant 0 : i32
    %0 = arith.cmpi eq, %arg1, %c0_i32 : i32
    %1 = arith.extui %0 : i1 to i32
    %c0_i32_0 = arith.constant 0 : i32
    %2 = arith.cmpi ne, %1, %c0_i32_0 : i32
    scf.if %2 {
      %cst_36 = arith.constant 0.000000e+00 : f32
      %57 = vector.broadcast %cst_36 : f32 to vector<1x8x128xf32>
      %c0_37 = arith.constant 0 : index
      %c0_38 = arith.constant 0 : index
      %c0_39 = arith.constant 0 : index
      %58 = vector.load %arg9[%c0_37, %c0_38, %c0_39] : memref<1x8x128xf32, #tpu.memory_space<vmem>>, vector<1x8x128xf32>
      tpu.vector_store %arg9[%c0_37, %c0_38, %c0_39], %57 {strides = array<i32>} : memref<1x8x128xf32, #tpu.memory_space<vmem>>, vector<1x8x128xf32>,
      %cst_40 = arith.constant 0.000000e+00 : f32
      %59 = vector.broadcast %cst_40 : f32 to vector<1x8x128xf32>
      %c0_41 = arith.constant 0 : index
      %c0_42 = arith.constant 0 : index
      %c0_43 = arith.constant 0 : index
      %60 = vector.load %arg10[%c0_41, %c0_42, %c0_43] : memref<1x8x128xf32, #tpu.memory_space<vmem>>, vector<1x8x128xf32>
      tpu.vector_store %arg10[%c0_41, %c0_42, %c0_43], %59 {strides = array<i32>} : memref<1x8x128xf32, #tpu.memory_space<vmem>>, vector<1x8x128xf32>,
    } else {
    }
    %c0 = arith.constant 0 : index
    %c0_1 = arith.constant 0 : index
    %3 = vector.load %arg2[%c0, %c0_1] : memref<8x32xf32, #tpu.memory_space<vmem>>, vector<8x32xf32>
    %4 = arith.truncf %3 : vector<8x32xf32> to vector<8x32xbf16>
    %c0_2 = arith.constant 0 : index
    %c0_3 = arith.constant 0 : index
    %5 = vector.load %arg3[%c0_2, %c0_3] : memref<32x128xbf16, #tpu.memory_space<vmem>>, vector<32x128xbf16>
    %cst = arith.constant dense<0.000000e+00> : vector<8x128xf32>
    %6 = tpu.matmul %4, %5, %cst {dimension_numbers = #tpu.dot_dimension_numbers<[1], [0], [0], [1], [0, 0, 1, 1], [], []>} : vector<8x32xbf16>, vector<32x128xbf16>, vector<8x128xf32> -> vector<8x128xf32>
    %c0_4 = arith.constant 0 : index
    %c0_5 = arith.constant 0 : index
    %7 = vector.load %arg4[%c0_4, %c0_5] : memref<1x128xf32, #tpu.memory_space<vmem>>, vector<1x128xf32>
    %8 = vector.broadcast %7 : vector<1x128xf32> to vector<8x128xf32>
    %9 = arith.addf %6, %8 : vector<8x128xf32>
    %cst_6 = arith.constant 0.000000e+00 : f32
    %10 = vector.broadcast %cst_6 : f32 to vector<8x128xf32>
    %11 = arith.maximumf %9, %10 : vector<8x128xf32>
    %12 = arith.truncf %11 : vector<8x128xf32> to vector<8x128xbf16>
    %c0_7 = arith.constant 0 : index
    %c0_8 = arith.constant 0 : index
    %13 = vector.load %arg5[%c0_7, %c0_8] : memref<128x128xbf16, #tpu.memory_space<vmem>>, vector<128x128xbf16>
    %cst_9 = arith.constant dense<0.000000e+00> : vector<8x128xf32>
    %14 = tpu.matmul %12, %13, %cst_9 {dimension_numbers = #tpu.dot_dimension_numbers<[1], [0], [0], [1], [0, 0, 1, 1], [], []>} : vector<8x128xbf16>, vector<128x128xbf16>, vector<8x128xf32> -> vector<8x128xf32>
    %c0_10 = arith.constant 0 : index
    %c0_11 = arith.constant 0 : index
    %15 = vector.load %arg6[%c0_10, %c0_11] : memref<1x128xf32, #tpu.memory_space<vmem>>, vector<1x128xf32>
    %16 = vector.broadcast %15 : vector<1x128xf32> to vector<8x128xf32>
    %17 = arith.addf %14, %16 : vector<8x128xf32>
    %cst_12 = arith.constant 0.000000e+00 : f32
    %18 = vector.broadcast %cst_12 : f32 to vector<8x128xf32>
    %19 = arith.maximumf %17, %18 : vector<8x128xf32>
    %20 = arith.truncf %19 : vector<8x128xf32> to vector<8x128xbf16>
    %c0_13 = arith.constant 0 : index
    %c0_14 = arith.constant 0 : index
    %21 = vector.load %arg7[%c0_13, %c0_14] : memref<128x128xbf16, #tpu.memory_space<vmem>>, vector<128x128xbf16>
    %cst_15 = arith.constant dense<0.000000e+00> : vector<8x128xf32>
    %22 = tpu.matmul %20, %21, %cst_15 {dimension_numbers = #tpu.dot_dimension_numbers<[1], [0], [0], [1], [0, 0, 1, 1], [], []>} : vector<8x128xbf16>, vector<128x128xbf16>, vector<8x128xf32> -> vector<8x128xf32>
    %c0_16 = arith.constant 0 : index
    %c0_17 = arith.constant 0 : index
    %23 = vector.load %arg8[%c0_16, %c0_17] : memref<1x128xf32, #tpu.memory_space<vmem>>, vector<1x128xf32>
    %24 = vector.broadcast %23 : vector<1x128xf32> to vector<8x128xf32>
    %25 = arith.addf %22, %24 : vector<8x128xf32>
    %c1_i32 = arith.constant 1 : i32
    %26 = arith.muli %arg0, %c1_i32 : i32
    %27 = arith.addi %26, %arg1 : i32
    %c8_i32 = arith.constant 8 : i32
    %28 = arith.muli %27, %c8_i32 : i32
    %29 = tpu.iota {dimensions = array<i32: 0>} : vector<8x1xi32>
    %30 = vector.broadcast %28 : i32 to vector<8x1xi32>
    %31 = arith.addi %30, %29 : vector<8x1xi32>
    %c8_i32_18 = arith.constant 8 : i32
    %32 = vector.broadcast %c8_i32_18 : i32 to vector<8x1xi32>
    %33 = arith.cmpi slt, %31, %32 : vector<8x1xi32>
    %34 = arith.mulf %25, %25 : vector<8x128xf32>
    %cst_19 = arith.constant dense<0.000000e+00> : vector<8xf32>
    %35 = vector.multi_reduction <add>, %34, %cst_19 [1] : vector<8x128xf32> to vector<8xf32>
    %36 = vector.shape_cast %35 : vector<8xf32> to vector<8x1xf32>
    %cst_20 = arith.constant 9.99999993E-9 : f32
    %37 = vector.broadcast %cst_20 : f32 to vector<8x1xf32>
    %38 = arith.maximumf %36, %37 : vector<8x1xf32>
    %39 = math.rsqrt %38 : vector<8x1xf32>
    %cst_21 = arith.constant 0.000000e+00 : f32
    %40 = vector.broadcast %cst_21 : f32 to vector<8x1xf32>
    %41 = arith.select %33, %39, %40 : vector<8x1xi1>, vector<8x1xf32>
    %42 = vector.broadcast %41 : vector<8x1xf32> to vector<8x128xf32>
    %43 = arith.mulf %25, %42 : vector<8x128xf32>
    %c0_22 = arith.constant 0 : index
    %c0_23 = arith.constant 0 : index
    %c0_24 = arith.constant 0 : index
    %44 = vector.load %arg9[%c0_22, %c0_23, %c0_24] : memref<1x8x128xf32, #tpu.memory_space<vmem>>, vector<1x8x128xf32>
    %45 = vector.shape_cast %43 : vector<8x128xf32> to vector<1x8x128xf32>
    %cst_25 = arith.constant dense<0.000000e+00> : vector<8x128xf32>
    %46 = vector.multi_reduction <add>, %45, %cst_25 [0] : vector<1x8x128xf32> to vector<8x128xf32>
    %47 = vector.shape_cast %46 : vector<8x128xf32> to vector<1x8x128xf32>
    %48 = arith.addf %44, %47 : vector<1x8x128xf32>
    %c0_26 = arith.constant 0 : index
    %c0_27 = arith.constant 0 : index
    %c0_28 = arith.constant 0 : index
    %49 = vector.load %arg9[%c0_26, %c0_27, %c0_28] : memref<1x8x128xf32, #tpu.memory_space<vmem>>, vector<1x8x128xf32>
    tpu.vector_store %arg9[%c0_26, %c0_27, %c0_28], %48 {strides = array<i32>} : memref<1x8x128xf32, #tpu.memory_space<vmem>>, vector<1x8x128xf32>,
    %c0_29 = arith.constant 0 : index
    %c0_30 = arith.constant 0 : index
    %c0_31 = arith.constant 0 : index
    %50 = vector.load %arg10[%c0_29, %c0_30, %c0_31] : memref<1x8x128xf32, #tpu.memory_space<vmem>>, vector<1x8x128xf32>
    %51 = arith.mulf %43, %43 : vector<8x128xf32>
    %52 = vector.shape_cast %51 : vector<8x128xf32> to vector<1x8x128xf32>
    %cst_32 = arith.constant dense<0.000000e+00> : vector<8x128xf32>
    %53 = vector.multi_reduction <add>, %52, %cst_32 [0] : vector<1x8x128xf32> to vector<8x128xf32>
    %54 = vector.shape_cast %53 : vector<8x128xf32> to vector<1x8x128xf32>
    %55 = arith.addf %50, %54 : vector<1x8x128xf32>
    %c0_33 = arith.constant 0 : index
    %c0_34 = arith.constant 0 : index
    %c0_35 = arith.constant 0 : index
    %56 = vector.load %arg10[%c0_33, %c0_34, %c0_35] : memref<1x8x128xf32, #tpu.memory_space<vmem>>, vector<1x8x128xf32>
    tpu.vector_store %arg10[%c0_33, %c0_34, %c0_35], %55 {strides = array<i32>} : memref<1x8x128xf32, #tpu.memory_space<vmem>>, vector<1x8x128xf32>,
    return
  }
  func.func @transform_0(%arg0: i32, %arg1: i32) -> (i32, i32) {
    %c1_i32 = arith.constant 1 : i32
    %0 = arith.muli %arg0, %c1_i32 : i32
    %1 = arith.addi %0, %arg1 : i32
    %c0_i32 = arith.constant 0 : i32
    %c0_i32_0 = arith.constant 0 : i32
    return %1, %c0_i32 : i32, i32
  }
  func.func @transform_1(%arg0: i32, %arg1: i32) -> (i32, i32) {
    %c0_i32 = arith.constant 0 : i32
    %c0_i32_0 = arith.constant 0 : i32
    %c0_i32_1 = arith.constant 0 : i32
    return %c0_i32, %c0_i32_0 : i32, i32
  }
  func.func @transform_2(%arg0: i32, %arg1: i32) -> (i32, i32) {
    %c0_i32 = arith.constant 0 : i32
    %c0_i32_0 = arith.constant 0 : i32
    %c0_i32_1 = arith.constant 0 : i32
    return %c0_i32, %c0_i32_0 : i32, i32
  }
  func.func @transform_3(%arg0: i32, %arg1: i32) -> (i32, i32) {
    %c0_i32 = arith.constant 0 : i32
    %c0_i32_0 = arith.constant 0 : i32
    %c0_i32_1 = arith.constant 0 : i32
    return %c0_i32, %c0_i32_0 : i32, i32
  }
  func.func @transform_4(%arg0: i32, %arg1: i32) -> (i32, i32) {
    %c0_i32 = arith.constant 0 : i32
    %c0_i32_0 = arith.constant 0 : i32
    %c0_i32_1 = arith.constant 0 : i32
    return %c0_i32, %c0_i32_0 : i32, i32
  }
  func.func @transform_5(%arg0: i32, %arg1: i32) -> (i32, i32) {
    %c0_i32 = arith.constant 0 : i32
    %c0_i32_0 = arith.constant 0 : i32
    %c0_i32_1 = arith.constant 0 : i32
    return %c0_i32, %c0_i32_0 : i32, i32
  }
  func.func @transform_6(%arg0: i32, %arg1: i32) -> (i32, i32) {
    %c0_i32 = arith.constant 0 : i32
    %c0_i32_0 = arith.constant 0 : i32
    %c0_i32_1 = arith.constant 0 : i32
    return %c0_i32, %c0_i32_0 : i32, i32
  }
  func.func @transform_7(%arg0: i32, %arg1: i32) -> (i32, i32, i32) {
    %c0_i32 = arith.constant 0 : i32
    %c0_i32_0 = arith.constant 0 : i32
    %c0_i32_1 = arith.constant 0 : i32
    return %arg0, %c0_i32, %c0_i32_0 : i32, i32, i32
  }
  func.func @transform_8(%arg0: i32, %arg1: i32) -> (i32, i32, i32) {
    %c0_i32 = arith.constant 0 : i32
    %c0_i32_0 = arith.constant 0 : i32
    %c0_i32_1 = arith.constant 0 : i32
    return %arg0, %c0_i32, %c0_i32_0 : i32, i32, i32
  }
}

</mosaic_0001>

<llo_original>
// kernel: tpu_custom_call.1
$region0: #{tpu_custom_call.1}
  #allocation0 [shape = 'u32[]', space=smem, size = 0x4, offset = 0x4, fixed_abs, tag = 'smem constant byte address 0x4 - core index']
  #allocation1 [shape = 'u32[72,128]{1,0:T(1,128)}', space=vmem, size = 0x9000, scoped, tag = 'internal scratch']
  %s0 = inlined_call_operand.hbm [shape: f32[8,32], index: 0, kind: input, shape index: {}]
  %s1 = inlined_call_operand.hbm [shape: bf16[32,128], index: 1, kind: input, shape index: {}]
  %s2 = inlined_call_operand.vmem [shape: f32[1,128], index: 2, kind: input, shape index: {}]
  %s3 = inlined_call_operand.hbm [shape: bf16[128,128], index: 3, kind: input, shape index: {}]
  %s4 = inlined_call_operand.vmem [shape: f32[1,128], index: 4, kind: input, shape index: {}]
  %s5 = inlined_call_operand.hbm [shape: bf16[128,128], index: 5, kind: input, shape index: {}]
  %s6 = inlined_call_operand.vmem [shape: f32[1,128], index: 6, kind: input, shape index: {}]
  %s7 = inlined_call_operand.hbm [shape: f32[1,8,128], index: 7, kind: output, shape index: {0}]
  %s8 = inlined_call_operand.hbm [shape: f32[1,8,128], index: 8, kind: output, shape index: {1}]
  %9 = xla_tuple %s7, %s8
  %s10 = sld [smem:[#allocation0]]
  $region66: #{tpu_custom_call.1} parent=0
    _
  %s12 = ssub.s32 1, %s10
  %s13 = scalar_select 0, %s12, %s10
  $region1: #{tpu_custom_call.1} parent=0
    #allocation2 [shape = 'u8[4096]{0}', space=vmem, size = 0x1000, scoped, tag = 'input window, operand 0, single buffered']
    #allocation3 [shape = 's32[1]{0}', space=sflag, size = 0x4, scoped, tag = 'scoped memory for tpu_custom_call.1']
    #allocation4 [shape = 's32[1]{0}', space=sflag, size = 0x4, scoped, tag = 'scoped memory for tpu_custom_call.1']
    #allocation5 [shape = 'u8[8192]{0}', space=vmem, size = 0x2000, scoped, tag = 'input window, operand 1, single buffered']
    #allocation6 [shape = 's32[1]{0}', space=sflag, size = 0x4, scoped, tag = 'scoped memory for tpu_custom_call.1']
    #allocation7 [shape = 'u8[32768]{0}', space=vmem, size = 0x8000, scoped, tag = 'input window, operand 3, single buffered']
    #allocation8 [shape = 'u8[32768]{0}', space=vmem, size = 0x8000, scoped, tag = 'input window, operand 5, single buffered']
    #allocation9 [shape = 's32[1]{0}', space=sflag, size = 0x4, scoped, tag = 'scoped memory for tpu_custom_call.1']
    #allocation10 [shape = 'u8[4096]{0}', space=vmem, size = 0x1000, scoped, tag = 'output window, operand 0, single buffered']
    #allocation11 [shape = 'u8[4096]{0}', space=vmem, size = 0x1000, scoped, tag = 'output window, operand 1, single buffered']
    #allocation12 [shape = 's32[1]{0}', space=sflag, size = 0x4, scoped, tag = 'scoped memory for tpu_custom_call.1']
    %14 = vsyncpa [#allocation3], 0
    %15 = vsyncpa [#allocation6], 0
    %16 = vsyncpa [#allocation9], 0
    %17 = vsyncpa [#allocation4], 0
    %18 = vsyncpa [#allocation12], 0
    // Predicated region
    $region2: #{tpu_custom_call.1} parent=1 // pred_check
      _
    $region3: #{tpu_custom_call.1} parent=1 // pred_check_branch
      %20 = sbr.rel (0) target = $region5
    $region4: #{tpu_custom_call.1} parent=1 // pred_region
      %s21 = sadd.s32 0, 0
      %23 = vsyncadd [#allocation3], 0
      %s24 = smul.addr %s21, 8
      %s25 = scalar_lea.hbm %s0, %s24
      %s27 = sshll.u32 %s25, 4
      %s28 = int_to_ptr.hbm [resolvable:$true] %s27
      %s29 = sshll.u32 [#allocation2], 4
      %s30 = int_to_ptr.vmem [resolvable:$true] %s29
      %32 = dma.hbm_to_vmem [thread:$0]  %s28, 128, %s30, [#allocation3]
    $region5: #{tpu_custom_call.1} parent=1 // pred_fallthru
      _
    // Predicated region
    $region6: #{tpu_custom_call.1} parent=1 // pred_check
      _
    $region7: #{tpu_custom_call.1} parent=1 // pred_check_branch
      %34 = sbr.rel (0) target = $region9
    $region8: #{tpu_custom_call.1} parent=1 // pred_region
      %36 = vsyncadd [#allocation6], 0
      %s37 = sshll.u32 %s1, 4
      %s38 = int_to_ptr.hbm [resolvable:$true] %s37
      %s39 = sshll.u32 [#allocation5], 4
      %s40 = int_to_ptr.vmem [resolvable:$true] %s39
      %45 = dma.hbm_to_vmem [thread:$0]  %s38, 256, %s40, [#allocation6], 64, 64, 4
    $region9: #{tpu_custom_call.1} parent=1 // pred_fallthru
      _
    // Predicated region
    $region10: #{tpu_custom_call.1} parent=1 // pred_check
      _
    $region11: #{tpu_custom_call.1} parent=1 // pred_check_branch
      %47 = sbr.rel (0) target = $region13
    $region12: #{tpu_custom_call.1} parent=1 // pred_region
      _
    $region13: #{tpu_custom_call.1} parent=1 // pred_fallthru
      _
    // Predicated region
    $region14: #{tpu_custom_call.1} parent=1 // pred_check
      _
    $region15: #{tpu_custom_call.1} parent=1 // pred_check_branch
      %49 = sbr.rel (0) target = $region17
    $region16: #{tpu_custom_call.1} parent=1 // pred_region
      %51 = vsyncadd [#allocation6], 0
      %s52 = sshll.u32 %s3, 4
      %s53 = int_to_ptr.hbm [resolvable:$true] %s52
      %s54 = sshll.u32 [#allocation7], 4
      %s55 = int_to_ptr.vmem [resolvable:$true] %s54
      %60 = dma.hbm_to_vmem [thread:$0]  %s53, 1024, %s55, [#allocation6], 64, 64, 4
    $region17: #{tpu_custom_call.1} parent=1 // pred_fallthru
      _
    // Predicated region
    $region18: #{tpu_custom_call.1} parent=1 // pred_check
      _
    $region19: #{tpu_custom_call.1} parent=1 // pred_check_branch
      %62 = sbr.rel (0) target = $region21
    $region20: #{tpu_custom_call.1} parent=1 // pred_region
      _
    $region21: #{tpu_custom_call.1} parent=1 // pred_fallthru
      _
    // Predicated region
    $region22: #{tpu_custom_call.1} parent=1 // pred_check
      _
    $region23: #{tpu_custom_call.1} parent=1 // pred_check_branch
      %64 = sbr.rel (0) target = $region25
    $region24: #{tpu_custom_call.1} parent=1 // pred_region
      %66 = vsyncadd [#allocation9], 0
      %s67 = sshll.u32 %s5, 4
      %s68 = int_to_ptr.hbm [resolvable:$true] %s67
      %s69 = sshll.u32 [#allocation8], 4
      %s70 = int_to_ptr.vmem [resolvable:$true] %s69
      %75 = dma.hbm_to_vmem [thread:$0]  %s68, 1024, %s70, [#allocation9], 64, 64, 4
    $region25: #{tpu_custom_call.1} parent=1 // pred_fallthru
      _
    // Predicated region
    $region26: #{tpu_custom_call.1} parent=1 // pred_check
      _
    $region27: #{tpu_custom_call.1} parent=1 // pred_check_branch
      %77 = sbr.rel (0) target = $region29
    $region28: #{tpu_custom_call.1} parent=1 // pred_region
      _
    $region29: #{tpu_custom_call.1} parent=1 // pred_fallthru
      _
    // Predicated region
    $region30: #{tpu_custom_call.1} parent=1 // pred_check
      _
    $region31: #{tpu_custom_call.1} parent=1 // pred_check_branch
      %79 = sbr.rel (0) target = $region33
    $region32: #{tpu_custom_call.1} parent=1 // pred_region
      %81 = dma.done [#allocation3], 128
    $region33: #{tpu_custom_call.1} parent=1 // pred_fallthru
      _
    // Predicated region
    $region34: #{tpu_custom_call.1} parent=1 // pred_check
      _
    $region35: #{tpu_custom_call.1} parent=1 // pred_check_branch
      %83 = sbr.rel (0) target = $region37
    $region36: #{tpu_custom_call.1} parent=1 // pred_region
      %85 = dma.done [#allocation6], 256
    $region37: #{tpu_custom_call.1} parent=1 // pred_fallthru
      _
    // Predicated region
    $region38: #{tpu_custom_call.1} parent=1 // pred_check
      _
    $region39: #{tpu_custom_call.1} parent=1 // pred_check_branch
      %87 = sbr.rel (0) target = $region41
    $region40: #{tpu_custom_call.1} parent=1 // pred_region
      %89 = dma.done [#allocation6], 1024
    $region41: #{tpu_custom_call.1} parent=1 // pred_fallthru
      _
    // Predicated region
    $region42: #{tpu_custom_call.1} parent=1 // pred_check
      _
    $region43: #{tpu_custom_call.1} parent=1 // pred_check_branch
      %91 = sbr.rel (0) target = $region45
    $region44: #{tpu_custom_call.1} parent=1 // pred_region
      %93 = dma.done [#allocation9], 1024
    $region45: #{tpu_custom_call.1} parent=1 // pred_fallthru
      _
    %s94 = sadd.s32 0, 0
    %p96 = scmp.eq.s32.totalorder 0, 0
    // Predicated region
    $region46: #{tpu_custom_call.1} parent=1 // pred_check
      %p97 = pneg %p96
    $region47: #{tpu_custom_call.1} parent=1 // pred_check_branch
      %99 = sbr.rel (%p97) target = $region49
    $region48: #{tpu_custom_call.1} parent=1 // pred_region
      %100 = vst [vmem:[#allocation10] sm:$0xff] 0.0
      %101 = vst [vmem:[#allocation11] sm:$0xff] 0.0
    $region49: #{tpu_custom_call.1} parent=1 // pred_fallthru
      _
    %v102 = vld [vmem:[#allocation2] sm:$0xff]
    %v103 = vpack.c.bf16 %v102, %v102
    %v104 = vld [vmem:[#allocation5] sm:$0xf]
    %v105 = vld [vmem:[#allocation5 + $0x4] sm:$0xf]
    %v106 = vld [vmem:[#allocation5 + $0x8] sm:$0xf]
    %v107 = vld [vmem:[#allocation5 + $0xc] sm:$0xf]
    %v108 = vld [vmem:[%s2] sm:$0x1]
    %v110 = vperm.slane %v108, 0
    %v116 = vunpack.c.l.b16 %v104
    %v117 = vunpack.c.l.b16 %v105
    %v118 = vunpack.c.l.b16 %v106
    %v119 = vunpack.c.l.b16 %v107
    %v120 = vpack.c.b16 %v117, %v116
    %v121 = vpack.c.b16 %v119, %v118
    %vm124 = vcmask 261120
    %v126 = vsel %vm124, %v103, 0
    %128 = vmatpush.bf16.msra.mxu0 0
    %129 = vmatpush.bf16.msra.mxu0 0
    %130 = vmatpush.bf16.msra.mxu0 0
    %131 = vmatpush.bf16.msra.mxu0 0
    %132 = vmatpush.bf16.msra.mxu0 0
    %133 = vmatpush.bf16.msra.mxu0 0
    %134 = vmatpush.bf16.msra.mxu0 %v121
    %135 = vmatpush.bf16.msra.mxu0 %v120
    %136 = vmatmul.bf16.gmra.mxu0 %v126
    %v137 = vpop.f32.mrf.mxu0
    %v138 = vadd.f32 %v110, %v137
    %v139 = vpop.f32.mrf.mxu0
    %140 = vdwg.mxu0
    %v141 = vmax.f32 %v138, 0.0
    %v142 = vpack.c.bf16 %v141, %v141
    %v143 = vld [vmem:[#allocation7] sm:$0xf]
    %v144 = vld [vmem:[#allocation7 + $0x4] sm:$0xf]
    %v145 = vld [vmem:[#allocation7 + $0x8] sm:$0xf]
    %v146 = vld [vmem:[#allocation7 + $0xc] sm:$0xf]
    %v147 = vld [vmem:[#allocation7 + $0x10] sm:$0xf]
    %v148 = vld [vmem:[#allocation7 + $0x14] sm:$0xf]
    %v149 = vld [vmem:[#allocation7 + $0x18] sm:$0xf]
    %v150 = vld [vmem:[#allocation7 + $0x1c] sm:$0xf]
    %v151 = vld [vmem:[#allocation7 + $0x20] sm:$0xf]
    %v152 = vld [vmem:[#allocation7 + $0x24] sm:$0xf]
    %v153 = vld [vmem:[#allocation7 + $0x28] sm:$0xf]
    %v154 = vld [vmem:[#allocation7 + $0x2c] sm:$0xf]
    %v155 = vld [vmem:[#allocation7 + $0x30] sm:$0xf]
    %v156 = vld [vmem:[#allocation7 + $0x34] sm:$0xf]
    %v157 = vld [vmem:[#allocation7 + $0x38] sm:$0xf]
    %v158 = vld [vmem:[#allocation7 + $0x3c] sm:$0xf]
    %v159 = vld [vmem:[%s4] sm:$0x1]
    %v161 = vperm.slane %v159, 0
    %v179 = vunpack.c.l.b16 %v143
    %v180 = vunpack.c.l.b16 %v144
    %v181 = vunpack.c.l.b16 %v145
    %v182 = vunpack.c.l.b16 %v146
    %v183 = vunpack.c.l.b16 %v147
    %v184 = vunpack.c.l.b16 %v148
    %v185 = vunpack.c.l.b16 %v149
    %v186 = vunpack.c.l.b16 %v150
    %v187 = vunpack.c.l.b16 %v151
    %v188 = vunpack.c.l.b16 %v152
    %v189 = vunpack.c.l.b16 %v153
    %v190 = vunpack.c.l.b16 %v154
    %v191 = vunpack.c.l.b16 %v155
    %v192 = vunpack.c.l.b16 %v156
    %v193 = vunpack.c.l.b16 %v157
    %v194 = vunpack.c.l.b16 %v158
    %v195 = vpack.c.b16 %v180, %v179
    %v196 = vpack.c.b16 %v182, %v181
    %v197 = vpack.c.b16 %v184, %v183
    %v198 = vpack.c.b16 %v186, %v185
    %v199 = vpack.c.b16 %v188, %v187
    %v200 = vpack.c.b16 %v190, %v189
    %v201 = vpack.c.b16 %v192, %v191
    %v202 = vpack.c.b16 %v194, %v193
    %211 = vmatpush.bf16.msra.mxu0 %v202
    %212 = vmatpush.bf16.msra.mxu0 %v201
    %213 = vmatpush.bf16.msra.mxu0 %v200
    %214 = vmatpush.bf16.msra.mxu0 %v199
    %215 = vmatpush.bf16.msra.mxu0 %v198
    %216 = vmatpush.bf16.msra.mxu0 %v197
    %217 = vmatpush.bf16.msra.mxu0 %v196
    %218 = vmatpush.bf16.msra.mxu0 %v195
    %219 = vmatmul.bf16.gmra.mxu0 %v142
    %v220 = vpop.f32.mrf.mxu0
    %v221 = vadd.f32 %v161, %v220
    %v222 = vpop.f32.mrf.mxu0
    %223 = vdwg.mxu0
    %v224 = vmax.f32 %v221, 0.0
    %v225 = vpack.c.bf16 %v224, %v224
    %v226 = vld [vmem:[#allocation8] sm:$0xf]
    %v227 = vld [vmem:[#allocation8 + $0x4] sm:$0xf]
    %v228 = vld [vmem:[#allocation8 + $0x8] sm:$0xf]
    %v229 = vld [vmem:[#allocation8 + $0xc] sm:$0xf]
    %v230 = vld [vmem:[#allocation8 + $0x10] sm:$0xf]
    %v231 = vld [vmem:[#allocation8 + $0x14] sm:$0xf]
    %v232 = vld [vmem:[#allocation8 + $0x18] sm:$0xf]
    %v233 = vld [vmem:[#allocation8 + $0x1c] sm:$0xf]
    %v234 = vld [vmem:[#allocation8 + $0x20] sm:$0xf]
    %v235 = vld [vmem:[#allocation8 + $0x24] sm:$0xf]
    %v236 = vld [vmem:[#allocation8 + $0x28] sm:$0xf]
    %v237 = vld [vmem:[#allocation8 + $0x2c] sm:$0xf]
    %v238 = vld [vmem:[#allocation8 + $0x30] sm:$0xf]
    %v239 = vld [vmem:[#allocation8 + $0x34] sm:$0xf]
    %v240 = vld [vmem:[#allocation8 + $0x38] sm:$0xf]
    %v241 = vld [vmem:[#allocation8 + $0x3c] sm:$0xf]
    %v242 = vld [vmem:[%s6] sm:$0x1]
    %v244 = vperm.slane %v242, 0
    %v262 = vunpack.c.l.b16 %v226
    %v263 = vunpack.c.l.b16 %v227
    %v264 = vunpack.c.l.b16 %v228
    %v265 = vunpack.c.l.b16 %v229
    %v266 = vunpack.c.l.b16 %v230
    %v267 = vunpack.c.l.b16 %v231
    %v268 = vunpack.c.l.b16 %v232
    %v269 = vunpack.c.l.b16 %v233
    %v270 = vunpack.c.l.b16 %v234
    %v271 = vunpack.c.l.b16 %v235
    %v272 = vunpack.c.l.b16 %v236
    %v273 = vunpack.c.l.b16 %v237
    %v274 = vunpack.c.l.b16 %v238
    %v275 = vunpack.c.l.b16 %v239
    %v276 = vunpack.c.l.b16 %v240
    %v277 = vunpack.c.l.b16 %v241
    %v278 = vpack.c.b16 %v263, %v262
    %v279 = vpack.c.b16 %v265, %v264
    %v280 = vpack.c.b16 %v267, %v266
    %v281 = vpack.c.b16 %v269, %v268
    %v282 = vpack.c.b16 %v271, %v270
    %v283 = vpack.c.b16 %v273, %v272
    %v284 = vpack.c.b16 %v275, %v274
    %v285 = vpack.c.b16 %v277, %v276
    %294 = vmatpush.bf16.msra.mxu0 %v285
    %295 = vmatpush.bf16.msra.mxu0 %v284
    %296 = vmatpush.bf16.msra.mxu0 %v283
    %297 = vmatpush.bf16.msra.mxu0 %v282
    %298 = vmatpush.bf16.msra.mxu0 %v281
    %299 = vmatpush.bf16.msra.mxu0 %v280
    %300 = vmatpush.bf16.msra.mxu0 %v279
    %301 = vmatpush.bf16.msra.mxu0 %v278
    %302 = vmatmul.bf16.gmra.mxu0 %v225
    %v303 = vpop.f32.mrf.mxu0
    %v304 = vadd.f32 %v244, %v303
    %v305 = vpop.f32.mrf.mxu0
    %306 = vdwg.mxu0
    %s307 = sadd.s32 0, 0
    %s308 = smul.u32 %s307, 8
    %v309 = vlaneseq
    %v310 = vshrl.u32 %v309, 7
    %v311 = vstv %s308
    %v312 = vadd.s32 %v311, %v310
    %vm313 = vcmp.lt.s32.totalorder %v312, 8
    %v314 = vmul.f32 %v304, %v304
    %315 = vadd.xlane.f32.xlu0 %v314
    %v316 = vpop.xlane.xlu0 %315
    %v317 = vmax.f32 %v316, 1e-08
    %v318 = vrsqrt.pop %v317
    %v319 = vmul.f32 %v318, %v317
    %v320 = vmul.f32 %v319, %v318
    %v321 = vmul.f32 0.5, %v320
    %v322 = vsub.f32 1.5, %v321
    %v323 = vmul.f32 %v318, %v322
    %vm324 = vweird.f32 %v317
    %vm325 = vweird.f32 %v318
    %vm326 = vmor %vm324, %vm325
    %v327 = vsel %vm326, %v318, %v323
    %v328 = vsel %vm313, %v327, 0.0
    %v329 = vmul.f32 %v304, %v328
    %v330 = vld [vmem:[#allocation10] sm:$0xff]
    %v331 = vadd.f32 %v329, 0.0
    %v332 = vadd.f32 %v330, %v331
    %333 = vst [vmem:[#allocation10] sm:$0xff] %v332
    %v334 = vld [vmem:[#allocation11] sm:$0xff]
    %v335 = vmul.f32 %v329, %v329
    %v336 = vadd.f32 %v335, 0.0
    %v337 = vadd.f32 %v334, %v336
    %338 = vst [vmem:[#allocation11] sm:$0xff] %v337
    // Predicated region
    $region50: #{tpu_custom_call.1} parent=1 // pred_check
      _
    $region51: #{tpu_custom_call.1} parent=1 // pred_check_branch
      %340 = sbr.rel (0) target = $region53
    $region52: #{tpu_custom_call.1} parent=1 // pred_region
      %342 = vsyncadd [#allocation4], 0
      %s344 = sshll.u32 [#allocation10], 4
      %s345 = int_to_ptr.vmem [resolvable:$true] %s344
      %s346 = sshll.u32 %s7, 4
      %s347 = int_to_ptr.hbm [resolvable:$true] %s346
      %349 = dma.vmem_to_hbm [thread:$0]  %s345, 128, %s347, [#allocation4]
    $region53: #{tpu_custom_call.1} parent=1 // pred_fallthru
      _
    // Predicated region
    $region54: #{tpu_custom_call.1} parent=1 // pred_check
      _
    $region55: #{tpu_custom_call.1} parent=1 // pred_check_branch
      %351 = sbr.rel (0) target = $region57
    $region56: #{tpu_custom_call.1} parent=1 // pred_region
      %353 = vsyncadd [#allocation12], 0
      %s355 = sshll.u32 [#allocation11], 4
      %s356 = int_to_ptr.vmem [resolvable:$true] %s355
      %s357 = sshll.u32 %s8, 4
      %s358 = int_to_ptr.hbm [resolvable:$true] %s357
      %360 = dma.vmem_to_hbm [thread:$0]  %s356, 128, %s358, [#allocation12]
    $region57: #{tpu_custom_call.1} parent=1 // pred_fallthru
      _
    // Predicated region
    $region58: #{tpu_custom_call.1} parent=1 // pred_check
      _
    $region59: #{tpu_custom_call.1} parent=1 // pred_check_branch
      %362 = sbr.rel (0) target = $region61
    $region60: #{tpu_custom_call.1} parent=1 // pred_region
      %364 = dma.done [#allocation4], 128
    $region61: #{tpu_custom_call.1} parent=1 // pred_fallthru
      _
    // Predicated region
    $region62: #{tpu_custom_call.1} parent=1 // pred_check
      _
    $region63: #{tpu_custom_call.1} parent=1 // pred_check_branch
      %366 = sbr.rel (0) target = $region65
    $region64: #{tpu_custom_call.1} parent=1 // pred_region
      %368 = dma.done [#allocation12], 128
    $region65: #{tpu_custom_call.1} parent=1 // pred_fallthru
      _
    %369 = vsyncpa [#allocation3], 1
    %370 = vsyncpa [#allocation6], 1
    %371 = vsyncpa [#allocation9], 1
    %372 = vsyncpa [#allocation4], 1
    %373 = vsyncpa [#allocation12], 1

</llo_original>
